<compile_context>
chip_gen: v5e
topology: v5e:2x2
jax: 0.10.0
libtpu: 0.0.40
codegen_flags: <defaults>
</compile_context>

<pallas_src>
import jax
import jax.numpy as jnp
from jax.experimental import pallas as pl
from jax.experimental.pallas import tpu as pltpu

_LANE = 128  # TPU lane width


def _compute_dtype(dtype):
    """bf16/f32 compute natively; everything else is upcast to f32."""
    dtype = jnp.dtype(dtype)
    if dtype in (jnp.dtype(jnp.float32), jnp.dtype(jnp.bfloat16)):
        return dtype
    return jnp.dtype(jnp.float32)


def _h_sigmoid_kernel(x_ref, o_ref):
    """Elementwise ReLU6(x + 3) * (1/6) on one (block_rows, cols) tile."""
    cdt = _compute_dtype(x_ref.dtype)
    x = x_ref[...].astype(cdt)
    y = jnp.minimum(jnp.maximum(x + jnp.asarray(3, cdt), jnp.asarray(0, cdt)),
                    jnp.asarray(6, cdt)) * jnp.asarray(1.0 / 6.0, cdt)
    o_ref[...] = y.astype(o_ref.dtype)


def _h_sigmoid_jnp(x):
    """Plain-jnp fallback for the tiny (<128 element) ragged tail."""
    cdt = _compute_dtype(x.dtype)
    xc = x.astype(cdt)
    y = jnp.clip(xc + jnp.asarray(3, cdt), jnp.asarray(0, cdt),
                 jnp.asarray(6, cdt)) * jnp.asarray(1.0 / 6.0, cdt)
    return y.astype(x.dtype)


def _sublane(dtype):
    """Native sublane packing for the dtype: 8 (32-bit), 16 (16-bit), 32 (8-bit)."""
    bits = jnp.dtype(dtype).itemsize * 8
    return max(8, 256 // bits)


def _chip_block_config():
    """(target block bytes, vmem_limit_bytes or None) per TPU generation."""
    try:
        kind = jax.devices()[0].device_kind.lower()
    except Exception:
        kind = ""
    if "v7" in kind:
        return 8 << 20, 48 << 20   # 8 MiB blocks; raise scoped VMEM toward 64 MiB phys
    if "v6" in kind:
        return 4 << 20, None       # fits under v6e's 32 MiB default scoped limit
    return 2 << 20, None           # v5e (16 MiB default scoped VMEM) and unknown chips


def _h_sigmoid_2d(x2):
    """Run the Pallas kernel over a lane-dense (rows, cols) view, cols % 128 == 0."""
    rows, cols = x2.shape
    itemsize = jnp.dtype(x2.dtype).itemsize
    sub = _sublane(x2.dtype)
    block_bytes, vmem_limit = _chip_block_config()

    # Block height: as tall as the per-block byte budget allows ...
    br_cap = max(sub, (block_bytes // (cols * itemsize)) // sub * sub)
    # ... but capped at ~half the rows so the grid has >= 2 blocks when possible
    # (lets the parallel grid axis shard across both TensorCores on v7x).
    half = pl.cdiv(pl.cdiv(rows, 2), sub) * sub
    br = min(br_cap, max(sub, half))

    return pl.pallas_call(
        _h_sigmoid_kernel,
        out_shape=jax.ShapeDtypeStruct((rows, cols), x2.dtype),
        grid=(pl.cdiv(rows, br),),                       # partial edge block is masked
        in_specs=[pl.BlockSpec((br, cols), lambda i: (i, 0))],
        out_specs=pl.BlockSpec((br, cols), lambda i: (i, 0)),
        compiler_params=pltpu.CompilerParams(
            dimension_semantics=("parallel",),
            vmem_limit_bytes=vmem_limit,
        ),
    )(x2)


def h_sigmoid(x):
    """Pallas TPU h_sigmoid: ReLU6(x + 3) / 6, same shape & dtype as input."""
    orig_shape = x.shape
    n = x.size
    if n == 0:
        return x
    flat = x.reshape(-1)

    # Choose a lane-dense column width.  Prefer the natural last dim when it is
    # already a multiple of 128 (layout-preserving reshape), else a divisor of n.
    cols = None
    if x.ndim >= 2 and orig_shape[-1] % _LANE == 0 and orig_shape[-1] <= 4096:
        cols = orig_shape[-1]
    else:
        for c in (1024, 512, 256, 128):
            if n % c == 0:
                cols = c
                break

    if cols is not None:
        # Common case: no padding, no slicing -- just a reshape into the kernel.
        out = _h_sigmoid_2d(flat.reshape(n // cols, cols))
        return out.reshape(orig_shape)

    # Truly ragged element count: Pallas on the 128-aligned prefix, tiny tail in jnp.
    n_main = (n // _LANE) * _LANE
    tail_out = _h_sigmoid_jnp(flat[n_main:])
    if n_main == 0:
        return tail_out.reshape(orig_shape)
    main_out = _h_sigmoid_2d(flat[:n_main].reshape(n_main // _LANE, _LANE)).reshape(-1)
    return jnp.concatenate([main_out, tail_out]).reshape(orig_shape)


def _reference_f32(x):
    """Pure-JAX f32 reference: relu6(x + 3) / 6 (matches PyTorch h_sigmoid)."""
    xf = x.astype(jnp.float32)
    return jnp.clip(xf + 3.0, 0.0, 6.0) / 6.0


if __name__ == "__main__":
    key = jax.random.PRNGKey(0)
    k1, k2, k3 = jax.random.split(key, 3)
    fwd = jax.jit(h_sigmoid)

    # Primary case: NCHW activation tensor (divisible path, zero extra HBM passes).
    x = jax.random.normal(k1, (2, 4, 16, 16), jnp.float32) * 4.0
    out = jax.block_until_ready(fwd(x))
    assert out.shape == x.shape and out.dtype == x.dtype
    assert jnp.allclose(out, _reference_f32(x), atol=1e-6, rtol=1e-6)
    assert bool(jnp.all((out >= 0.0) & (out <= 1.0)))

    # Ragged element count: exercises the aligned-prefix Pallas path + jnp tail.
    y = jax.random.normal(k2, (3, 5, 7, 11), jnp.float32) * 10.0
    out_y = jax.block_until_ready(fwd(y))
    assert out_y.shape == y.shape and out_y.dtype == y.dtype
    assert jnp.allclose(out_y, _reference_f32(y), atol=1e-6, rtol=1e-6)

    # bf16 path: native bf16 math in-kernel.
    z = (jax.random.normal(k3, (2, 4, 16, 16), jnp.float32) * 4.0).astype(jnp.bfloat16)
    out_z = jax.block_until_ready(fwd(z))
    assert out_z.shape == z.shape and out_z.dtype == z.dtype
    assert jnp.allclose(out_z.astype(jnp.float32), _reference_f32(z), atol=3e-2, rtol=3e-2)

    print("KERNEL_OK")
</pallas_src>

<mosaic_0001>
module attributes {stable_mosaic.version = 11 : i64} {
  func.func @_h_sigmoid_kernel(%arg0: i32, %arg1: memref<8x1024xf32, #tpu.memory_space<vmem>>, %arg2: memref<8x1024xf32, #tpu.memory_space<vmem>>) attributes {dimension_semantics = [#tpu.dimension_semantics<parallel>], iteration_bounds = array<i64: 1>, scalar_prefetch = 0 : i64, scratch_operands = 0 : i64, tpu.core_type = #tpu.core_type<tc>, window_params = [{transform_indices = @transform_0, window_bounds = array<i64: 8, 1024>}, {transform_indices = @transform_1, window_bounds = array<i64: 8, 1024>}]} {
    %c0 = arith.constant 0 : index
    %c0_0 = arith.constant 0 : index
    %0 = vector.load %arg1[%c0, %c0_0] : memref<8x1024xf32, #tpu.memory_space<vmem>>, vector<8x1024xf32>
    %cst = arith.constant 3.000000e+00 : f32
    %1 = vector.broadcast %cst : f32 to vector<8x1024xf32>
    %2 = arith.addf %0, %1 : vector<8x1024xf32>
    %cst_1 = arith.constant 0.000000e+00 : f32
    %3 = vector.broadcast %cst_1 : f32 to vector<8x1024xf32>
    %4 = arith.maximumf %2, %3 : vector<8x1024xf32>
    %cst_2 = arith.constant 6.000000e+00 : f32
    %5 = vector.broadcast %cst_2 : f32 to vector<8x1024xf32>
    %6 = arith.minimumf %4, %5 : vector<8x1024xf32>
    %cst_3 = arith.constant 0.166666672 : f32
    %7 = vector.broadcast %cst_3 : f32 to vector<8x1024xf32>
    %8 = arith.mulf %6, %7 : vector<8x1024xf32>
    %c0_4 = arith.constant 0 : index
    %c0_5 = arith.constant 0 : index
    %9 = vector.load %arg2[%c0_4, %c0_5] : memref<8x1024xf32, #tpu.memory_space<vmem>>, vector<8x1024xf32>
    tpu.vector_store %arg2[%c0_4, %c0_5], %8 {strides = array<i32>} : memref<8x1024xf32, #tpu.memory_space<vmem>>, vector<8x1024xf32>,
    return
  }
  func.func @transform_0(%arg0: i32) -> (i32, i32) {
    %c0_i32 = arith.constant 0 : i32
    %c0_i32_0 = arith.constant 0 : i32
    return %arg0, %c0_i32 : i32, i32
  }
  func.func @transform_1(%arg0: i32) -> (i32, i32) {
    %c0_i32 = arith.constant 0 : i32
    %c0_i32_0 = arith.constant 0 : i32
    return %arg0, %c0_i32 : i32, i32
  }
}

</mosaic_0001>

<llo_original>
// kernel: h_sigmoid.1
$region0: #{h_sigmoid.1}
  #allocation0 [shape = 'u32[]', space=smem, size = 0x4, offset = 0x4, fixed_abs, tag = 'smem constant byte address 0x4 - core index']
  #allocation1 [shape = 'u32[72,128]{1,0:T(1,128)}', space=vmem, size = 0x9000, scoped, tag = 'internal scratch']
  %s0 = inlined_call_operand.vmem [shape: f32[2,1024], index: 0, kind: input, shape index: {}]
  %s1 = inlined_call_operand.vmem [shape: f32[2,1024], index: 1, kind: output, shape index: {}]
  %s2 = sld [smem:[#allocation0]]
  $region33: #{h_sigmoid.1} parent=0
    _
  %s4 = ssub.s32 1, %s2
  %s5 = scalar_select 0, %s4, %s2
  $region1: #{h_sigmoid.1} parent=0
    #allocation2 [shape = 'u8[32768]{0}', space=vmem, size = 0x8000, scoped, tag = 'output window, operand 0, single buffered']
    // Predicated region
    $region2: #{h_sigmoid.1} parent=1 // pred_check
      _
    $region3: #{h_sigmoid.1} parent=1 // pred_check_branch
      %7 = sbr.rel (0) target = $region5
    $region4: #{h_sigmoid.1} parent=1 // pred_region
      _
    $region5: #{h_sigmoid.1} parent=1 // pred_fallthru
      _
    %v8 = vld [vmem:[%s0] sm:$0xff]
    %v9 = vld [vmem:[%s0 + $0x8] sm:$0xff]
    %v10 = vld [vmem:[%s0 + $0x10] sm:$0xff]
    %v11 = vld [vmem:[%s0 + $0x18] sm:$0xff]
    %v12 = vld [vmem:[%s0 + $0x20] sm:$0xff]
    %v13 = vld [vmem:[%s0 + $0x28] sm:$0xff]
    %v14 = vld [vmem:[%s0 + $0x30] sm:$0xff]
    %v15 = vld [vmem:[%s0 + $0x38] sm:$0xff]
    %v16 = vadd.f32 %v8, 3.0
    %v17 = vadd.f32 %v9, 3.0
    %v18 = vadd.f32 %v10, 3.0
    %v19 = vadd.f32 %v11, 3.0
    %v20 = vadd.f32 %v12, 3.0
    %v21 = vadd.f32 %v13, 3.0
    %v22 = vadd.f32 %v14, 3.0
    %v23 = vadd.f32 %v15, 3.0
    %v24 = vmax.f32 %v16, 0.0
    %v25 = vmax.f32 %v17, 0.0
    %v26 = vmax.f32 %v18, 0.0
    %v27 = vmax.f32 %v19, 0.0
    %v28 = vmax.f32 %v20, 0.0
    %v29 = vmax.f32 %v21, 0.0
    %v30 = vmax.f32 %v22, 0.0
    %v31 = vmax.f32 %v23, 0.0
    %v32 = vmin.f32 %v24, 6.0
    %v33 = vmin.f32 %v25, 6.0
    %v34 = vmin.f32 %v26, 6.0
    %v35 = vmin.f32 %v27, 6.0
    %v36 = vmin.f32 %v28, 6.0
    %v37 = vmin.f32 %v29, 6.0
    %v38 = vmin.f32 %v30, 6.0
    %v39 = vmin.f32 %v31, 6.0
    %v40 = vmul.f32 %v32, 0.16666667
    %v41 = vmul.f32 %v33, 0.16666667
    %v42 = vmul.f32 %v34, 0.16666667
    %v43 = vmul.f32 %v35, 0.16666667
    %v44 = vmul.f32 %v36, 0.16666667
    %v45 = vmul.f32 %v37, 0.16666667
    %v46 = vmul.f32 %v38, 0.16666667
    %v47 = vmul.f32 %v39, 0.16666667
    %48 = vst [vmem:[#allocation2] sm:$0xff] %v40
    %49 = vst [vmem:[#allocation2 + $0x8] sm:$0xff] %v41
    %50 = vst [vmem:[#allocation2 + $0x10] sm:$0xff] %v42
    %51 = vst [vmem:[#allocation2 + $0x18] sm:$0xff] %v43
    %52 = vst [vmem:[#allocation2 + $0x20] sm:$0xff] %v44
    %53 = vst [vmem:[#allocation2 + $0x28] sm:$0xff] %v45
    %54 = vst [vmem:[#allocation2 + $0x30] sm:$0xff] %v46
    %55 = vst [vmem:[#allocation2 + $0x38] sm:$0xff] %v47
    // Predicated region
    $region6: #{h_sigmoid.1} parent=1 // pred_check
      _
    $region7: #{h_sigmoid.1} parent=1 // pred_check_branch
      %57 = sbr.rel (0) target = $region9
    $region8: #{h_sigmoid.1} parent=1 // pred_region
      // Predicated region
      $region10: #{h_sigmoid.1} parent=8 // pred_check
        _
      $region11: #{h_sigmoid.1} parent=8 // pred_check_branch
        %59 = sbr.rel (0) target = $region13
      $region12: #{h_sigmoid.1} parent=8 // pred_region
        // Predicated region
        $region14: #{h_sigmoid.1} parent=12 // pred_check
          _
        $region15: #{h_sigmoid.1} parent=12 // pred_check_branch
          %61 = sbr.rel (0) target = $region17
        $region16: #{h_sigmoid.1} parent=12 // pred_region
          loop: start=0, step=1, limit=1
          $region18: #{h_sigmoid.1} parent=16 // loop_pre_header
            _
          $region19: #{h_sigmoid.1} parent=16 // loop_header
            %s63 = sphi 0, %s67
            %p64 = scmp.ge.s32.totalorder %s63, 1
            %s68 = sphi [#allocation2], [#allocation2]
            %s69 = sphi %s1, %s1
          $region20: #{h_sigmoid.1} parent=16 // loop_header_branch
            %66 = sbr.rel (%p64) target = $region24
          $region21: #{h_sigmoid.1} parent=16 // loop_body
            %v70 = vld [vmem:[%s68] sm:$0xff]
            %71 = vst [vmem:[%s69] sm:$0xff] %v70
            %v72 = vld [vmem:[%s68 + $0x8] sm:$0xff]
            %73 = vst [vmem:[%s69 + $0x8] sm:$0xff] %v72
          $region22: #{h_sigmoid.1} parent=16 // loop_footer
            %s67 = sadd.s32 1, %s63
          $region23: #{h_sigmoid.1} parent=16 // loop_footer_branch
            %62 = sbr.rel target = $region19
          $region24: #{h_sigmoid.1} parent=16 // loop_exit
            _
        $region17: #{h_sigmoid.1} parent=12 // pred_fallthru
          _
        // Predicated region
        $region25: #{h_sigmoid.1} parent=12 // pred_check
          _
        $region26: #{h_sigmoid.1} parent=12 // pred_check_branch
          %75 = sbr.rel target = $region28
        $region27: #{h_sigmoid.1} parent=12 // pred_region
          _
        $region28: #{h_sigmoid.1} parent=12 // pred_fallthru
          _
      $region13: #{h_sigmoid.1} parent=8 // pred_fallthru
        _
      %76 = vnop
    $region9: #{h_sigmoid.1} parent=1 // pred_fallthru
      _
    // Predicated region
    $region29: #{h_sigmoid.1} parent=1 // pred_check
      _
    $region30: #{h_sigmoid.1} parent=1 // pred_check_branch
      %78 = sbr.rel (0) target = $region32
    $region31: #{h_sigmoid.1} parent=1 // pred_region
      _
    $region32: #{h_sigmoid.1} parent=1 // pred_fallthru
      _

</llo_original>
